<compile_context>
chip_gen: v7x
topology: tpu7x:2x2x1
jax: 0.10.0
libtpu: 0.0.40
codegen_flags: <defaults>
</compile_context>

<pallas_src>
import functools
import math

import jax
import jax.numpy as jnp
from jax.experimental import pallas as pl
from jax.experimental.pallas import tpu as pltpu

NEG_SLOPE = 0.01        # nn.LeakyReLU default
MASK_FILL = -9e15       # matches -9000000000000000.0 in the PyTorch module


def _round_up(x, m):
    return ((x + m - 1) // m) * m


def _leaky(v):
    return jnp.where(v > 0, v, NEG_SLOPE * v)


def _elu(v):
    # ELU(alpha=1); clamp the exp argument so the unused branch never overflows.
    return jnp.where(v > 0, v, jnp.exp(jnp.minimum(v, 0.0)) - 1.0)


# --------------------------------------------------------------------------- #
# Kernel
# --------------------------------------------------------------------------- #
def gat_kernel(hk_ref, adj_ref, w_ref, a1_ref, a2_ref, o_ref,
               wh_ref, s1_ref, s2_ref, *, apply_elu, approx_recip, tile_q):
    # hk_ref : (1, Np, F_in)   all (padded) node features for this batch elem
    # adj_ref: (1, tq, Np)     int8 adjacency mask rows for this query tile
    # w_ref  : (F_in, F_out_p) a1_ref/a2_ref: (1, F_out_p) f32
    # o_ref  : (1, tq, F_out_p)
    # wh_ref : (Np, F_out_p)   persistent Wh scratch (compute dtype, e.g. bf16)
    # s1_ref : (Np, 1) f32     Wh . a1 per node (query scores)
    # s2_ref : (1, Np) f32     Wh . a2 per node (key scores, lane layout)
    q = pl.program_id(1)

    @pl.when(q == 0)
    def _project_once_per_batch():
        # Hoisted: projection + rank-1 score vectors, once per batch element.
        wh = jnp.dot(hk_ref[0], w_ref[...],
                     preferred_element_type=jnp.float32)          # (Np, F_out_p)
        a1 = a1_ref[...]                                          # (1, F_out_p)
        a2 = a2_ref[...]
        wh_ref[...] = wh.astype(wh_ref.dtype)
        s1_ref[...] = jnp.sum(wh * a1, axis=-1, keepdims=True)    # (Np, 1)
        # Key scores produced directly on the lane axis (no transpose).
        s2_ref[...] = jax.lax.dot_general(
            a2, wh, (((1,), (1,)), ((), ())),
            preferred_element_type=jnp.float32)                   # (1, Np)

    row0 = pl.multiple_of(q * tile_q, tile_q)
    s1 = s1_ref[pl.ds(row0, tile_q), :]                           # (tq, 1)

    # Rank-1 score matrix: pure VPU broadcast multiply (no MXU work).
    e = _leaky(s1 * s2_ref[...])                                  # (tq, Np)

    mask = adj_ref[0] != 0                                        # (tq, Np)
    e = jnp.where(mask, e, jnp.float32(MASK_FILL))

    # Masked, numerically stable softmax over keys (single max + single sum).
    e_max = jnp.max(e, axis=-1, keepdims=True)
    p = jnp.exp(e - e_max)
    denom = jnp.sum(p, axis=-1, keepdims=True)
    if approx_recip:
        att = p * pl.reciprocal(denom, approx=True)               # EUP slot
    else:
        att = p / denom
    att = jnp.where(mask, att, 0.0)

    # att @ Wh with compute-dtype operands (bf16 fast path) + f32 accumulate.
    h_prime = jnp.dot(att.astype(wh_ref.dtype), wh_ref[...],
                      preferred_element_type=jnp.float32)         # (tq, F_out_p)
    if apply_elu:
        h_prime = _elu(h_prime)

    o_ref[0] = h_prime.astype(o_ref.dtype)


# --------------------------------------------------------------------------- #
# VMEM sizing helpers (generation aware)
# --------------------------------------------------------------------------- #
def _vmem_budget():
    cap = 64 * 1024 * 1024            # conservative fallback (v7x physical)
    try:
        cap = int(pltpu.get_tpu_info().vmem_capacity_bytes)
    except Exception:
        pass
    # 16 MiB headroom for the compiler; cap at 100 MiB even on 128 MiB parts.
    return max(32 * 1024 * 1024, min(cap - 16 * 1024 * 1024, 100 * 1024 * 1024))


def _vmem_footprint(tq, np_, f_in, f_out_p, h_bytes, wh_bytes):
    lane_np = _round_up(np_, 128)
    adj = 2 * tq * lane_np * 1                      # int8 mask, double buffered
    hk = 2 * np_ * _round_up(f_in, 128) * h_bytes   # node features (lane padded)
    out = 2 * tq * f_out_p * h_bytes
    w = 2 * _round_up(f_in, 8) * f_out_p * h_bytes + 8 * 8 * f_out_p * 4
    wh = np_ * f_out_p * wh_bytes                   # persistent Wh scratch
    s1 = np_ * 128 * 4                              # (Np,1) f32, lane padded
    s2 = 8 * lane_np * 4                            # (1,Np) f32, sublane padded
    work = 2 * tq * lane_np * 4 + tq * lane_np * wh_bytes   # e/p/att working set
    proj = np_ * f_out_p * 4                        # f32 Wh temp during hoist
    return adj + hk + out + w + wh + s1 + s2 + work + proj


def _pick_tile_q(n, f_in, f_out_p, h_bytes, wh_bytes, budget):
    n32 = _round_up(max(n, 1), 32)
    chosen = 32
    for cand in (32, 64, 128, 256, 512, 1024):
        if cand > n32:
            break
        np_c = _round_up(n, cand)
        # Avoid >25% extra adjacency traffic from row/col padding.
        if np_c * np_c > (n32 * n32 * 5) // 4:
            continue
        if _vmem_footprint(cand, np_c, f_in, f_out_p, h_bytes, wh_bytes) <= budget:
            chosen = cand
    return chosen


# --------------------------------------------------------------------------- #
# Wrapper
# --------------------------------------------------------------------------- #
def gat_forward(h, adj, W, a, *, concat=True, compute_dtype=jnp.bfloat16,
                tile_q=None, interpret=False):
    """h: [B, N, F_in], adj: [B, N, N], W: [F_in, F_out], a: [2*F_out, 1]."""
    B, N, F_in = h.shape
    F_out = W.shape[1]
    assert W.shape == (F_in, F_out)
    assert a.shape == (2 * F_out, 1)
    assert adj.shape == (B, N, N)

    h_dtype = h.dtype
    compute_dtype = jnp.dtype(compute_dtype)
    h_bytes = jnp.dtype(h_dtype).itemsize
    wh_bytes = compute_dtype.itemsize

    # Projection stays on the input's native MXU path (bf16 h -> bf16 W).
    # a1/a2 stay f32: they are VPU-only and negligible in size.
    W_c = W.astype(h_dtype)
    a1 = a[:F_out].reshape(1, F_out).astype(jnp.float32)
    a2 = a[F_out:].reshape(1, F_out).astype(jnp.float32)

    # Lane-dense output / weight columns: pad F_out to a multiple of 128.
    F_out_p = _round_up(F_out, 128)
    if F_out_p != F_out:
        W_c = jnp.pad(W_c, ((0, 0), (0, F_out_p - F_out)))
        a1 = jnp.pad(a1, ((0, 0), (0, F_out_p - F_out)))
        a2 = jnp.pad(a2, ((0, 0), (0, F_out_p - F_out)))

    budget = _vmem_budget()
    if tile_q is None:
        tq = _pick_tile_q(N, F_in, F_out_p, h_bytes, wh_bytes, budget)
    else:
        tq = max(32, _round_up(tile_q, 32))
    Np = _round_up(N, tq)

    if Np != N:
        # Padded rows/cols carry adj == 0 -> fully masked -> finite softmax,
        # zeroed output rows, sliced off below.
        h = jnp.pad(h, ((0, 0), (0, Np - N), (0, 0)))
        adj = jnp.pad(adj, ((0, 0), (0, Np - N), (0, Np - N)))

    # Narrow adjacency mask: 4x less HBM traffic and VMEM than f32 adj.
    adj_mask = (adj > 0).astype(jnp.int8)

    grid = (B, Np // tq)
    approx_recip = compute_dtype != jnp.dtype(jnp.float32)
    kernel = functools.partial(gat_kernel, apply_elu=concat,
                               approx_recip=approx_recip, tile_q=tq)

    flops = 2 * B * (Np * F_in * F_out_p + Np * Np * F_out_p + Np * F_out_p)
    bytes_accessed = (B * Np * F_in * h_bytes          # node features
                      + B * Np * Np                    # int8 mask
                      + B * Np * F_out_p * h_bytes     # output
                      + F_in * F_out_p * h_bytes + 2 * F_out_p * 4)
    cost = pl.CostEstimate(flops=int(flops),
                           transcendentals=int(B * Np * Np),
                           bytes_accessed=int(bytes_accessed))

    # TODO(synk): for very large graphs (Np so big that a (tq, Np) tile no
    # longer fits VMEM) add a key-axis tile loop with an online flash-style
    # masked softmax instead of shrinking tq further.
    # TODO(synk): when B == 1 on v7x, precompute Wh in a separate call so the
    # q axis can be 'parallel' and shard across both TensorCores.
    out = pl.pallas_call(
        kernel,
        out_shape=jax.ShapeDtypeStruct((B, Np, F_out_p), h_dtype),
        grid_spec=pltpu.PrefetchScalarGridSpec(
            num_scalar_prefetch=0,
            grid=grid,
            in_specs=[
                pl.BlockSpec((1, Np, F_in), lambda b, q: (b, 0, 0)),    # h (all nodes)
                pl.BlockSpec((1, tq, Np), lambda b, q: (b, q, 0)),      # adj mask rows
                pl.BlockSpec((F_in, F_out_p), lambda b, q: (0, 0)),     # W
                pl.BlockSpec((1, F_out_p), lambda b, q: (0, 0)),        # a1
                pl.BlockSpec((1, F_out_p), lambda b, q: (0, 0)),        # a2
            ],
            out_specs=pl.BlockSpec((1, tq, F_out_p), lambda b, q: (b, q, 0)),
            scratch_shapes=[
                pltpu.VMEM((Np, F_out_p), compute_dtype),   # Wh (hoisted)
                pltpu.VMEM((Np, 1), jnp.float32),           # s1 = Wh . a1
                pltpu.VMEM((1, Np), jnp.float32),           # s2 = Wh . a2 (row)
            ],
        ),
        compiler_params=pltpu.CompilerParams(
            dimension_semantics=("parallel", "arbitrary"),
            vmem_limit_bytes=int(budget),
        ),
        cost_estimate=cost,
        interpret=interpret,
    )(h, adj_mask, W_c, a1, a2)

    return out[:, :N, :F_out]


# --------------------------------------------------------------------------- #
# Plain-JAX reference (mirrors the PyTorch forward exactly)
# --------------------------------------------------------------------------- #
def gat_reference(h, adj, W, a, concat=True):
    F_out = W.shape[1]
    h = h.astype(jnp.float32)
    Wh = h @ W.astype(jnp.float32)                        # [B, N, F_out]
    Wh_a1 = Wh @ a[:F_out].astype(jnp.float32)            # [B, N, 1]
    Wh_a2 = Wh @ a[F_out:].astype(jnp.float32)            # [B, N, 1]
    e = _leaky(Wh_a1 @ jnp.swapaxes(Wh_a2, 1, 2))         # [B, N, N]
    e = jnp.where(adj > 0, e, MASK_FILL)
    att = jax.nn.softmax(e, axis=2)
    att = jnp.where(adj > 0, att, 0.0)
    h_prime = att @ Wh
    return _elu(h_prime) if concat else h_prime


def xavier_uniform(key, shape, gain=1.414, dtype=jnp.float32):
    bound = gain * math.sqrt(6.0 / (shape[0] + shape[1]))
    return jax.random.uniform(key, shape, jnp.float32, -bound, bound).astype(dtype)


if __name__ == "__main__":
    key = jax.random.PRNGKey(0)
    k_h, k_adj, k_w, k_a = jax.random.split(key, 4)

    batch, nodes, in_features, out_features = 2, 16, 32, 32

    h = jax.random.normal(k_h, (batch, nodes, in_features), jnp.float32)
    adj = (jax.random.uniform(k_adj, (batch, nodes, nodes)) > 0.5).astype(jnp.float32)
    adj = jnp.maximum(adj, jnp.eye(nodes, dtype=jnp.float32)[None])   # self loops

    W = xavier_uniform(k_w, (in_features, out_features))
    a = xavier_uniform(k_a, (2 * out_features, 1))

    ref_cat = gat_reference(h, adj, W, a, concat=True)
    ref_nc = gat_reference(h, adj, W, a, concat=False)

    # 1) Default fast path: bf16 operands for att @ Wh, approx reciprocal.
    out_fast = jax.block_until_ready(gat_forward(h, adj, W, a, concat=True))
    assert out_fast.shape == (batch, nodes, out_features)
    err_fast = float(jnp.max(jnp.abs(out_fast.astype(jnp.float32) - ref_cat)))
    assert err_fast < 5e-2, err_fast

    # 2) Full-precision path (tight structural check).
    out_f32 = jax.block_until_ready(
        gat_forward(h, adj, W, a, concat=True, compute_dtype=jnp.float32))
    err_f32 = float(jnp.max(jnp.abs(out_f32.astype(jnp.float32) - ref_cat)))
    assert err_f32 < 2e-3, err_f32

    # 3) concat=False branch (no ELU).
    out_nc = jax.block_until_ready(
        gat_forward(h, adj, W, a, concat=False, compute_dtype=jnp.float32))
    err_nc = float(jnp.max(jnp.abs(out_nc.astype(jnp.float32) - ref_nc)))
    assert err_nc < 2e-3, err_nc

    print("KERNEL_OK")
</pallas_src>

<mosaic_0001>
module attributes {stable_mosaic.version = 11 : i64} {
  func.func @gat_kernel(%arg0: i32, %arg1: i32, %arg2: memref<1x32x32xf32, #tpu.memory_space<vmem>>, %arg3: memref<1x32x32xi8, #tpu.memory_space<vmem>>, %arg4: memref<32x128xf32, #tpu.memory_space<vmem>>, %arg5: memref<1x128xf32, #tpu.memory_space<vmem>>, %arg6: memref<1x128xf32, #tpu.memory_space<vmem>>, %arg7: memref<1x32x128xf32, #tpu.memory_space<vmem>>, %arg8: memref<32x128xbf16, #tpu.memory_space<vmem>>, %arg9: memref<32x1xf32, #tpu.memory_space<vmem>>, %arg10: memref<1x32xf32, #tpu.memory_space<vmem>>) attributes {dimension_semantics = [#tpu.dimension_semantics<parallel>, #tpu.dimension_semantics<arbitrary>], iteration_bounds = array<i64: 2, 1>, scalar_prefetch = 0 : i64, scratch_operands = 3 : i64, tpu.core_type = #tpu.core_type<tc>, window_params = [{transform_indices = @transform_0, window_bounds = array<i64: 1, 32, 32>}, {transform_indices = @transform_1, window_bounds = array<i64: 1, 32, 32>}, {pipeline_mode = #tpu.pipeline_mode<synchronous>, transform_indices = @transform_2, window_bounds = array<i64: 32, 128>}, {pipeline_mode = #tpu.pipeline_mode<synchronous>, transform_indices = @transform_3, window_bounds = array<i64: 1, 128>}, {pipeline_mode = #tpu.pipeline_mode<synchronous>, transform_indices = @transform_4, window_bounds = array<i64: 1, 128>}, {transform_indices = @transform_5, window_bounds = array<i64: 1, 32, 128>}]} {
    %c0_i32 = arith.constant 0 : i32
    %0 = arith.cmpi eq, %arg1, %c0_i32 : i32
    %1 = arith.extui %0 : i1 to i32
    %c0_i32_0 = arith.constant 0 : i32
    %2 = arith.cmpi ne, %1, %c0_i32_0 : i32
    scf.if %2 {
      %c0_20 = arith.constant 0 : index
      %c0_21 = arith.constant 0 : index
      %c0_22 = arith.constant 0 : index
      %48 = vector.load %arg2[%c0_20, %c0_21, %c0_22] : memref<1x32x32xf32, #tpu.memory_space<vmem>>, vector<1x32x32xf32>
      %49 = vector.shape_cast %48 : vector<1x32x32xf32> to vector<32x32xf32>
      %c0_23 = arith.constant 0 : index
      %c0_24 = arith.constant 0 : index
      %50 = vector.load %arg4[%c0_23, %c0_24] : memref<32x128xf32, #tpu.memory_space<vmem>>, vector<32x128xf32>
      %cst_25 = arith.constant dense<0.000000e+00> : vector<32x128xf32>
      %51 = tpu.matmul %49, %50, %cst_25 {dimension_numbers = #tpu.dot_dimension_numbers<[1], [0], [0], [1], [0, 0, 1, 1], [], []>} : vector<32x32xf32>, vector<32x128xf32>, vector<32x128xf32> -> vector<32x128xf32>
      %c0_26 = arith.constant 0 : index
      %c0_27 = arith.constant 0 : index
      %52 = vector.load %arg5[%c0_26, %c0_27] : memref<1x128xf32, #tpu.memory_space<vmem>>, vector<1x128xf32>
      %c0_28 = arith.constant 0 : index
      %c0_29 = arith.constant 0 : index
      %53 = vector.load %arg6[%c0_28, %c0_29] : memref<1x128xf32, #tpu.memory_space<vmem>>, vector<1x128xf32>
      %54 = arith.truncf %51 : vector<32x128xf32> to vector<32x128xbf16>
      %c0_30 = arith.constant 0 : index
      %c0_31 = arith.constant 0 : index
      %55 = vector.load %arg8[%c0_30, %c0_31] : memref<32x128xbf16, #tpu.memory_space<vmem>>, vector<32x128xbf16>
      tpu.vector_store %arg8[%c0_30, %c0_31], %54 {strides = array<i32>} : memref<32x128xbf16, #tpu.memory_space<vmem>>, vector<32x128xbf16>,
      %56 = vector.broadcast %52 : vector<1x128xf32> to vector<32x128xf32>
      %57 = arith.mulf %51, %56 : vector<32x128xf32>
      %cst_32 = arith.constant dense<0.000000e+00> : vector<32xf32>
      %58 = vector.multi_reduction <add>, %57, %cst_32 [1] : vector<32x128xf32> to vector<32xf32>
      %59 = vector.shape_cast %58 : vector<32xf32> to vector<32x1xf32>
      %c0_33 = arith.constant 0 : index
      %c0_34 = arith.constant 0 : index
      %60 = vector.load %arg9[%c0_33, %c0_34] : memref<32x1xf32, #tpu.memory_space<vmem>>, vector<32x1xf32>
      tpu.vector_store %arg9[%c0_33, %c0_34], %59 {strides = array<i32>} : memref<32x1xf32, #tpu.memory_space<vmem>>, vector<32x1xf32>,
      %cst_35 = arith.constant dense<0.000000e+00> : vector<1x32xf32>
      %61 = tpu.matmul %53, %51, %cst_35 {dimension_numbers = #tpu.dot_dimension_numbers<[1], [1], [0], [0], [0, 0, 1, 0], [], []>} : vector<1x128xf32>, vector<32x128xf32>, vector<1x32xf32> -> vector<1x32xf32>
      %c0_36 = arith.constant 0 : index
      %c0_37 = arith.constant 0 : index
      %62 = vector.load %arg10[%c0_36, %c0_37] : memref<1x32xf32, #tpu.memory_space<vmem>>, vector<1x32xf32>
      tpu.vector_store %arg10[%c0_36, %c0_37], %61 {strides = array<i32>} : memref<1x32xf32, #tpu.memory_space<vmem>>, vector<1x32xf32>,
    } else {
    }
    %c32_i32 = arith.constant 32 : i32
    %3 = arith.muli %arg1, %c32_i32 : i32
    %4 = tpu.assume_multiple %3, 32 : i32
    %5 = arith.index_cast %4 : i32 to index
    %c0 = arith.constant 0 : index
    %6 = vector.load %arg9[%5, %c0] : memref<32x1xf32, #tpu.memory_space<vmem>>, vector<32x1xf32>
    %c0_1 = arith.constant 0 : index
    %c0_2 = arith.constant 0 : index
    %7 = vector.load %arg10[%c0_1, %c0_2] : memref<1x32xf32, #tpu.memory_space<vmem>>, vector<1x32xf32>
    %8 = vector.broadcast %6 : vector<32x1xf32> to vector<32x32xf32>
    %9 = vector.broadcast %7 : vector<1x32xf32> to vector<32x32xf32>
    %10 = arith.mulf %8, %9 : vector<32x32xf32>
    %cst = arith.constant 0.000000e+00 : f32
    %11 = vector.broadcast %cst : f32 to vector<32x32xf32>
    %12 = arith.cmpf ogt, %10, %11 : vector<32x32xf32>
    %cst_3 = arith.constant 0.00999999977 : f32
    %13 = vector.broadcast %cst_3 : f32 to vector<32x32xf32>
    %14 = arith.mulf %13, %10 : vector<32x32xf32>
    %15 = arith.select %12, %10, %14 : vector<32x32xi1>, vector<32x32xf32>
    %c0_4 = arith.constant 0 : index
    %c0_5 = arith.constant 0 : index
    %c0_6 = arith.constant 0 : index
    %16 = vector.load %arg3[%c0_4, %c0_5, %c0_6] : memref<1x32x32xi8, #tpu.memory_space<vmem>>, vector<1x32x32xi8>
    %17 = vector.shape_cast %16 : vector<1x32x32xi8> to vector<32x32xi8>
    %c0_i8 = arith.constant 0 : i8
    %18 = vector.broadcast %c0_i8 : i8 to vector<32x32xi8>
    %19 = arith.cmpi ne, %17, %18 : vector<32x32xi8>
    %cst_7 = arith.constant -9.000000e+15 : f32
    %20 = vector.broadcast %cst_7 : f32 to vector<32x32xf32>
    %21 = arith.select %19, %15, %20 : vector<32x32xi1>, vector<32x32xf32>
    %cst_8 = arith.constant dense<0xFF800000> : vector<32xf32>
    %22 = vector.multi_reduction <maximumf>, %21, %cst_8 [1] : vector<32x32xf32> to vector<32xf32>
    %23 = vector.shape_cast %22 : vector<32xf32> to vector<32x1xf32>
    %24 = vector.broadcast %23 : vector<32x1xf32> to vector<32x32xf32>
    %25 = arith.subf %21, %24 : vector<32x32xf32>
    %26 = math.exp %25 : vector<32x32xf32>
    %cst_9 = arith.constant dense<0.000000e+00> : vector<32xf32>
    %27 = vector.multi_reduction <add>, %26, %cst_9 [1] : vector<32x32xf32> to vector<32xf32>
    %28 = vector.shape_cast %27 : vector<32xf32> to vector<32x1xf32>
    %29 = tpu.reciprocal %28 {approx = true} : vector<32x1xf32> -> vector<32x1xf32>
    %30 = vector.broadcast %29 : vector<32x1xf32> to vector<32x32xf32>
    %31 = arith.mulf %26, %30 : vector<32x32xf32>
    %cst_10 = arith.constant 0.000000e+00 : f32
    %32 = vector.broadcast %cst_10 : f32 to vector<32x32xf32>
    %33 = arith.select %19, %31, %32 : vector<32x32xi1>, vector<32x32xf32>
    %34 = arith.truncf %33 : vector<32x32xf32> to vector<32x32xbf16>
    %c0_11 = arith.constant 0 : index
    %c0_12 = arith.constant 0 : index
    %35 = vector.load %arg8[%c0_11, %c0_12] : memref<32x128xbf16, #tpu.memory_space<vmem>>, vector<32x128xbf16>
    %cst_13 = arith.constant dense<0.000000e+00> : vector<32x128xf32>
    %36 = tpu.matmul %34, %35, %cst_13 {dimension_numbers = #tpu.dot_dimension_numbers<[1], [0], [0], [1], [0, 0, 1, 1], [], []>} : vector<32x32xbf16>, vector<32x128xbf16>, vector<32x128xf32> -> vector<32x128xf32>
    %cst_14 = arith.constant 0.000000e+00 : f32
    %37 = vector.broadcast %cst_14 : f32 to vector<32x128xf32>
    %38 = arith.cmpf ogt, %36, %37 : vector<32x128xf32>
    %cst_15 = arith.constant 0.000000e+00 : f32
    %39 = vector.broadcast %cst_15 : f32 to vector<32x128xf32>
    %40 = arith.minimumf %36, %39 : vector<32x128xf32>
    %41 = math.exp %40 : vector<32x128xf32>
    %cst_16 = arith.constant 1.000000e+00 : f32
    %42 = vector.broadcast %cst_16 : f32 to vector<32x128xf32>
    %43 = arith.subf %41, %42 : vector<32x128xf32>
    %44 = arith.select %38, %36, %43 : vector<32x128xi1>, vector<32x128xf32>
    %c0_17 = arith.constant 0 : index
    %c0_18 = arith.constant 0 : index
    %c0_19 = arith.constant 0 : index
    %45 = vector.load %arg7[%c0_17, %c0_18, %c0_19] : memref<1x32x128xf32, #tpu.memory_space<vmem>>, vector<1x32x128xf32>
    %46 = vector.shape_cast %45 : vector<1x32x128xf32> to vector<32x128xf32>
    %47 = vector.shape_cast %44 : vector<32x128xf32> to vector<1x32x128xf32>
    tpu.vector_store %arg7[%c0_17, %c0_18, %c0_19], %47 {strides = array<i32>} : memref<1x32x128xf32, #tpu.memory_space<vmem>>, vector<1x32x128xf32>,
    return
  }
  func.func @transform_0(%arg0: i32, %arg1: i32) -> (i32, i32, i32) {
    %c0_i32 = arith.constant 0 : i32
    %c0_i32_0 = arith.constant 0 : i32
    %c0_i32_1 = arith.constant 0 : i32
    return %arg0, %c0_i32, %c0_i32_0 : i32, i32, i32
  }
  func.func @transform_1(%arg0: i32, %arg1: i32) -> (i32, i32, i32) {
    %c0_i32 = arith.constant 0 : i32
    %c0_i32_0 = arith.constant 0 : i32
    return %arg0, %arg1, %c0_i32 : i32, i32, i32
  }
  func.func @transform_2(%arg0: i32, %arg1: i32) -> (i32, i32) {
    %c0_i32 = arith.constant 0 : i32
    %c0_i32_0 = arith.constant 0 : i32
    %c0_i32_1 = arith.constant 0 : i32
    return %c0_i32, %c0_i32_0 : i32, i32
  }
  func.func @transform_3(%arg0: i32, %arg1: i32) -> (i32, i32) {
    %c0_i32 = arith.constant 0 : i32
    %c0_i32_0 = arith.constant 0 : i32
    %c0_i32_1 = arith.constant 0 : i32
    return %c0_i32, %c0_i32_0 : i32, i32
  }
  func.func @transform_4(%arg0: i32, %arg1: i32) -> (i32, i32) {
    %c0_i32 = arith.constant 0 : i32
    %c0_i32_0 = arith.constant 0 : i32
    %c0_i32_1 = arith.constant 0 : i32
    return %c0_i32, %c0_i32_0 : i32, i32
  }
  func.func @transform_5(%arg0: i32, %arg1: i32) -> (i32, i32, i32) {
    %c0_i32 = arith.constant 0 : i32
    %c0_i32_0 = arith.constant 0 : i32
    return %arg0, %arg1, %c0_i32 : i32, i32, i32
  }
}

</mosaic_0001>

<llo_original>
// kernel: tpu_custom_call.1
$region0: #{tpu_custom_call.1}
  #allocation0 [shape = 'u32[]', space=smem, size = 0x4, offset = 0x4, fixed_abs, tag = 'smem constant byte address 0x4 - core index']
  #allocation1 [shape = 'u32[144,128]{1,0:T(1,128)}', space=vmem, size = 0x12000, scoped, tag = 'internal scratch']
  #allocation2 [shape = 'bf16[32,128]{1,0:T(16,128)(2,1)}', space=vmem, size = 0x2000, scoped, tag = 'scratch operand']
  #allocation3 [shape = 'f32[32,1]{1,0:T(8,128)}', space=vmem, size = 0x4000, scoped, tag = 'scratch operand']
  #allocation4 [shape = 'f32[1,32]{1,0:T(1,128)}', space=vmem, size = 0x200, scoped, tag = 'scratch operand']
  %s0 = inlined_call_operand.hbm [shape: f32[2,32,32], index: 0, kind: input, shape index: {}]
  %s1 = inlined_call_operand.hbm [shape: s8[2,32,32], index: 1, kind: input, shape index: {}]
  %s2 = inlined_call_operand.hbm [shape: f32[32,128], index: 2, kind: input, shape index: {}]
  %s3 = inlined_call_operand.vmem [shape: f32[1,128], index: 3, kind: input, shape index: {}]
  %s4 = inlined_call_operand.vmem [shape: f32[1,128], index: 4, kind: input, shape index: {}]
  %s5 = inlined_call_operand.hbm [shape: f32[2,32,128], index: 5, kind: output, shape index: {}]
  %s6 = sld [smem:[#allocation0]]
  $region69: #{tpu_custom_call.1} parent=0
    _
  %s8 = ssub.s32 1, %s6
  %s9 = scalar_select 0, %s8, %s6
  $region1: #{tpu_custom_call.1} parent=0
    #allocation5 [shape = 'u8[32768]{0}', space=vmem, size = 0x8000, scoped, tag = 'input window, operand 0']
    #allocation6 [shape = 's32[2]{0}', space=sflag, size = 0x8, scoped, tag = 'scoped memory for tpu_custom_call.1']
    #allocation7 [shape = 's32[2]{0}', space=sflag, size = 0x8, scoped, tag = 'scoped memory for tpu_custom_call.1']
    #allocation8 [shape = 'u8[8192]{0}', space=vmem, size = 0x2000, scoped, tag = 'input window, operand 1']
    #allocation9 [shape = 's32[2]{0}', space=sflag, size = 0x8, scoped, tag = 'scoped memory for tpu_custom_call.1']
    #allocation10 [shape = 'u8[16384]{0}', space=vmem, size = 0x4000, scoped, tag = 'input window, operand 2, single buffered']
    #allocation11 [shape = 'u8[32768]{0}', space=vmem, size = 0x8000, scoped, tag = 'output window, operand 0']
    %10 = vsyncpa [#allocation6], 0
    %s11 = scalar_lea.sflag [#allocation6], 1
    %12 = vsyncpa %s11, 0
    %13 = vsyncpa [#allocation9], 0
    %s14 = scalar_lea.sflag [#allocation9], 1
    %15 = vsyncpa %s14, 0
    %16 = vsyncpa [#allocation7], 0
    %s17 = scalar_lea.sflag [#allocation7], 1
    %18 = vsyncpa %s17, 0
    loop: start=0, step=1, limit=4
    $region2: #{tpu_custom_call.1} parent=1 // loop_pre_header
      _
    $region3: #{tpu_custom_call.1} parent=1 // loop_header
      %s20 = sphi 0, %s24
      %p21 = scmp.ge.s32.totalorder %s20, 4
      %s27 = sphi 0, %s39
      %s28 = sphi 0, %s35
      %s29 = sphi 0, %s27
      %s30 = sphi 0, %s28
      %s31 = sphi 0, %s29
      %s32 = sphi 0, %s30
      %s42 = sphi 0, %s44
      %s45 = sphi 0, %s42
      %s46 = sphi 0, %s45
      %s62 = sphi 0, %s46
      %s70 = sphi 0, %s72
      %s73 = sphi 0, %s70
      %s74 = sphi 0, %s73
      %s90 = sphi 0, %s74
      %s94 = sphi 0, %s94
      %s96 = sphi 0, %s94
      %s97 = sphi 0, %s96
      %s111 = sphi 0, %s97
      %s115 = sphi 0, %s115
      %s117 = sphi 0, %s115
      %s118 = sphi 0, %s117
      %s132 = sphi 0, %s118
      %s136 = sphi 0, %s136
      %s138 = sphi 0, %s136
      %s139 = sphi 0, %s138
      %s153 = sphi 0, %s139
      %s161 = sphi 0, %s163
      %s164 = sphi 0, %s161
      %s165 = sphi 0, %s164
      %s181 = sphi 0, %s165
    $region4: #{tpu_custom_call.1} parent=1 // loop_header_branch
      %23 = sbr.rel (%p21) target = $region8
    $region5: #{tpu_custom_call.1} parent=1 // loop_body
      %s25 = ssub.s32 %s20, 1
      %s26 = ssub.s32 %s20, 2
      %s33 = sadd.s32 1, %s28
      %p34 = scmp.ge.s32.totalorder %s33, 1
      %s35 = scalar_select %p34, 0, %s33
      %s36 = sadd.s32 1, %s27
      %s37 = scalar_select %p34, %s36, %s27
      %p38 = scmp.ge.s32.totalorder %s37, 2
      %s39 = scalar_select %p38, 0, %s37
      %s40 = ssub.s32 %s27, %s39
      %p41 = scmp.eq.s32.totalorder %s40, 0
      %s43 = sadd.s32 %s42, 1
      %s44 = scalar_select %p41, %s42, %s43
      %p47 = pneg %p41
      %p48 = scmp.eq.s32.totalorder %s20, 1
      %p49 = por %p47, %p48
      %p50 = scmp.ne.s32.totalorder %s42, %s45
      %p51 = scmp.eq.s32.totalorder %s20, 0
      %p52 = por %p50, %p51
      %p53 = scmp.ne.s32.totalorder %s42, %s45
      %p54 = scmp.eq.s32.totalorder %s25, 1
      %p55 = por %p53, %p54
      %p56 = scmp.ne.s32.totalorder %s45, %s46
      %p57 = scmp.eq.s32.totalorder %s25, 0
      %p58 = por %p56, %p57
      %p59 = scmp.ne.s32.totalorder %s45, %s46
      %p60 = scmp.eq.s32.totalorder %s26, 1
      %p61 = por %p59, %p60
      %p63 = scmp.ne.s32.totalorder %s46, %s62
      %p64 = scmp.eq.s32.totalorder %s26, 0
      %p65 = por %p63, %p64
      %s66 = ssub.s32 %s27, %s39
      %s67 = ssub.s32 %s28, %s35
      %s68 = sor.u32 %s66, %s67
      %p69 = scmp.eq.s32.totalorder %s68, 0
      %s71 = sadd.s32 %s70, 1
      %s72 = scalar_select %p69, %s70, %s71
      %p75 = pneg %p69
      %p76 = scmp.eq.s32.totalorder %s20, 1
      %p77 = por %p75, %p76
      %p78 = scmp.ne.s32.totalorder %s70, %s73
      %p79 = scmp.eq.s32.totalorder %s20, 0
      %p80 = por %p78, %p79
      %p81 = scmp.ne.s32.totalorder %s70, %s73
      %p82 = scmp.eq.s32.totalorder %s25, 1
      %p83 = por %p81, %p82
      %p84 = scmp.ne.s32.totalorder %s73, %s74
      %p85 = scmp.eq.s32.totalorder %s25, 0
      %p86 = por %p84, %p85
      %p87 = scmp.ne.s32.totalorder %s73, %s74
      %p88 = scmp.eq.s32.totalorder %s26, 1
      %p89 = por %p87, %p88
      %p91 = scmp.ne.s32.totalorder %s74, %s90
      %p92 = scmp.eq.s32.totalorder %s26, 0
      %p93 = por %p91, %p92
      %s95 = sadd.s32 %s94, 1
      %p98 = scmp.eq.s32.totalorder %s20, 1
      %p99 = scmp.ne.s32.totalorder %s94, %s96
      %p100 = scmp.eq.s32.totalorder %s20, 0
      %p101 = por %p99, %p100
      %p102 = scmp.ne.s32.totalorder %s94, %s96
      %p103 = scmp.eq.s32.totalorder %s25, 1
      %p104 = por %p102, %p103
      %p105 = scmp.ne.s32.totalorder %s96, %s97
      %p106 = scmp.eq.s32.totalorder %s25, 0
      %p107 = por %p105, %p106
      %p108 = scmp.ne.s32.totalorder %s96, %s97
      %p109 = scmp.eq.s32.totalorder %s26, 1
      %p110 = por %p108, %p109
      %p112 = scmp.ne.s32.totalorder %s97, %s111
      %p113 = scmp.eq.s32.totalorder %s26, 0
      %p114 = por %p112, %p113
      %s116 = sadd.s32 %s115, 1
      %p119 = scmp.eq.s32.totalorder %s20, 1
      %p120 = scmp.ne.s32.totalorder %s115, %s117
      %p121 = scmp.eq.s32.totalorder %s20, 0
      %p122 = por %p120, %p121
      %p123 = scmp.ne.s32.totalorder %s115, %s117
      %p124 = scmp.eq.s32.totalorder %s25, 1
      %p125 = por %p123, %p124
      %p126 = scmp.ne.s32.totalorder %s117, %s118
      %p127 = scmp.eq.s32.totalorder %s25, 0
      %p128 = por %p126, %p127
      %p129 = scmp.ne.s32.totalorder %s117, %s118
      %p130 = scmp.eq.s32.totalorder %s26, 1
      %p131 = por %p129, %p130
      %p133 = scmp.ne.s32.totalorder %s118, %s132
      %p134 = scmp.eq.s32.totalorder %s26, 0
      %p135 = por %p133, %p134
      %s137 = sadd.s32 %s136, 1
      %p140 = scmp.eq.s32.totalorder %s20, 1
      %p141 = scmp.ne.s32.totalorder %s136, %s138
      %p142 = scmp.eq.s32.totalorder %s20, 0
      %p143 = por %p141, %p142
      %p144 = scmp.ne.s32.totalorder %s136, %s138
      %p145 = scmp.eq.s32.totalorder %s25, 1
      %p146 = por %p144, %p145
      %p147 = scmp.ne.s32.totalorder %s138, %s139
      %p148 = scmp.eq.s32.totalorder %s25, 0
      %p149 = por %p147, %p148
      %p150 = scmp.ne.s32.totalorder %s138, %s139
      %p151 = scmp.eq.s32.totalorder %s26, 1
      %p152 = por %p150, %p151
      %p154 = scmp.ne.s32.totalorder %s139, %s153
      %p155 = scmp.eq.s32.totalorder %s26, 0
      %p156 = por %p154, %p155
      %s157 = ssub.s32 %s27, %s39
      %s158 = ssub.s32 %s28, %s35
      %s159 = sor.u32 %s157, %s158
      %p160 = scmp.eq.s32.totalorder %s159, 0
      %s162 = sadd.s32 %s161, 1
      %s163 = scalar_select %p160, %s161, %s162
      %p166 = pneg %p160
      %p167 = scmp.eq.s32.totalorder %s20, 1
      %p168 = por %p166, %p167
      %p169 = scmp.ne.s32.totalorder %s161, %s164
      %p170 = scmp.eq.s32.totalorder %s20, 0
      %p171 = por %p169, %p170
      %p172 = scmp.ne.s32.totalorder %s161, %s164
      %p173 = scmp.eq.s32.totalorder %s25, 1
      %p174 = por %p172, %p173
      %p175 = scmp.ne.s32.totalorder %s164, %s165
      %p176 = scmp.eq.s32.totalorder %s25, 0
      %p177 = por %p175, %p176
      %p178 = scmp.ne.s32.totalorder %s164, %s165
      %p179 = scmp.eq.s32.totalorder %s26, 1
      %p180 = por %p178, %p179
      %p182 = scmp.ne.s32.totalorder %s165, %s181
      %p183 = scmp.eq.s32.totalorder %s26, 0
      %p184 = por %p182, %p183
      %p185 = scmp.le.s32.totalorder 1, %s20
      %p186 = scmp.lt.s32.totalorder %s20, 3
      %p187 = pnand %p185, %p186
      %p188 = pneg %p187
      // Predicated region
      $region9: #{tpu_custom_call.1} parent=5 // pred_check
        _
      $region10: #{tpu_custom_call.1} parent=5 // pred_check_branch
        %190 = sbr.rel (%p187) target = $region12
      $region11: #{tpu_custom_call.1} parent=5 // pred_region
        %s191 = ssub.s32 %s20, 1
        // Predicated region
        $region13: #{tpu_custom_call.1} parent=11 // pred_check
          %p192 = pneg %p107
        $region14: #{tpu_custom_call.1} parent=11 // pred_check_branch
          %194 = sbr.rel (%p192) target = $region16
        $region15: #{tpu_custom_call.1} parent=11 // pred_region
          %s196 = ssub.s32 512, 512
          %197 = vsyncadd [#allocation9], %s196
          %s198 = sshll.u32 [#allocation10], 4
          %s199 = int_to_ptr.vmem [resolvable:$true] %s198
          %204 = dma.hbm_to_vmem [thread:$0]  %s2, 512, %s199, [#allocation9], 128, 128, 8
        $region16: #{tpu_custom_call.1} parent=11 // pred_fallthru
          _
        // Predicated region
        $region17: #{tpu_custom_call.1} parent=11 // pred_check
          %p205 = pneg %p128
        $region18: #{tpu_custom_call.1} parent=11 // pred_check_branch
          %207 = sbr.rel (%p205) target = $region20
        $region19: #{tpu_custom_call.1} parent=11 // pred_region
          _
        $region20: #{tpu_custom_call.1} parent=11 // pred_fallthru
          _
        // Predicated region
        $region21: #{tpu_custom_call.1} parent=11 // pred_check
          %p208 = pneg %p149
        $region22: #{tpu_custom_call.1} parent=11 // pred_check_branch
          %210 = sbr.rel (%p208) target = $region24
        $region23: #{tpu_custom_call.1} parent=11 // pred_region
          _
        $region24: #{tpu_custom_call.1} parent=11 // pred_fallthru
          _
      $region12: #{tpu_custom_call.1} parent=5 // pred_fallthru
        _
      %p211 = scmp.lt.s32.totalorder %s20, 2
      // Predicated region
      $region25: #{tpu_custom_call.1} parent=5 // pred_check
        %p212 = pneg %p211
      $region26: #{tpu_custom_call.1} parent=5 // pred_check_branch
        %214 = sbr.rel (%p212) target = $region28
      $region27: #{tpu_custom_call.1} parent=5 // pred_region
        // Predicated region
        $region29: #{tpu_custom_call.1} parent=27 // pred_check
          %p215 = pneg %p52
        $region30: #{tpu_custom_call.1} parent=27 // pred_check_branch
          %217 = sbr.rel (%p215) target = $region32
        $region31: #{tpu_custom_call.1} parent=27 // pred_region
          %s218 = sand.u32 %s42, 1
          %s219 = scalar_lea.sflag [#allocation6], %s218
          %s220 = sand.u32 %s42, 1
          %s221 = smul.addr %s220, 32
          %s222 = scalar_lea.vmem [#allocation5], %s221
          %s224 = ssub.s32 512, 512
          %225 = vsyncadd %s219, %s224
          %s226 = smul.addr %s27, 4
          %s227 = smul.addr %s226, 128
          %s228 = scalar_lea.hbm %s0, %s227
          %s229 = sshll.u32 %s222, 4
          %s230 = int_to_ptr.vmem [resolvable:$true] %s229
          %235 = dma.hbm_to_vmem [thread:$0]  %s228, 512, %s230, %s219, 128, 128, 8
        $region32: #{tpu_custom_call.1} parent=27 // pred_fallthru
          _
        // Predicated region
        $region33: #{tpu_custom_call.1} parent=27 // pred_check
          %p236 = pneg %p80
        $region34: #{tpu_custom_call.1} parent=27 // pred_check_branch
          %238 = sbr.rel (%p236) target = $region36
        $region35: #{tpu_custom_call.1} parent=27 // pred_region
          %s239 = sand.u32 %s20, 1
          %s240 = scalar_lea.sflag [#allocation9], %s239
          %s241 = sand.u32 %s70, 1
          %s242 = smul.addr %s241, 8
          %s243 = scalar_lea.vmem [#allocation8], %s242
          %s245 = ssub.s32 128, 128
          %246 = vsyncadd %s240, %s245
          %s247 = sadd.s32 %s28, %s27
          %s248 = smul.addr %s247, 128
          %s249 = scalar_lea.hbm %s1, %s248
          %s251 = sshll.u32 %s243, 4
          %s252 = int_to_ptr.vmem [resolvable:$true] %s251
          %254 = dma.hbm_to_vmem [thread:$0]  %s249, 128, %s252, %s240
        $region36: #{tpu_custom_call.1} parent=27 // pred_fallthru
          _
      $region28: #{tpu_custom_call.1} parent=5 // pred_fallthru
        _
      %p255 = scmp.le.s32.totalorder 1, %s20
      %p256 = scmp.lt.s32.totalorder %s20, 3
      %p257 = pnand %p255, %p256
      %p258 = pneg %p257
      // Predicated region
      $region37: #{tpu_custom_call.1} parent=5 // pred_check
        _
      $region38: #{tpu_custom_call.1} parent=5 // pred_check_branch
        %260 = sbr.rel (%p257) target = $region40
      $region39: #{tpu_custom_call.1} parent=5 // pred_region
        %s261 = ssub.s32 %s20, 1
        %s262 = sand.u32 %s45, 1
        %s263 = scalar_lea.sflag [#allocation6], %s262
        %s264 = sand.u32 %s45, 1
        %s265 = smul.addr %s264, 32
        %s266 = scalar_lea.vmem [#allocation5], %s265
        // Predicated region
        $region41: #{tpu_custom_call.1} parent=39 // pred_check
          %p267 = pneg %p58
        $region42: #{tpu_custom_call.1} parent=39 // pred_check_branch
          %269 = sbr.rel (%p267) target = $region44
        $region43: #{tpu_custom_call.1} parent=39 // pred_region
          %270 = dma.done %s263, 512
        $region44: #{tpu_custom_call.1} parent=39 // pred_fallthru
          _
        %s271 = sand.u32 %s25, 1
        %s272 = scalar_lea.sflag [#allocation9], %s271
        %s273 = sand.u32 %s73, 1
        %s274 = smul.addr %s273, 8
        %s275 = scalar_lea.vmem [#allocation8], %s274
        // Predicated region
        $region45: #{tpu_custom_call.1} parent=39 // pred_check
          %p276 = pneg %p86
        $region46: #{tpu_custom_call.1} parent=39 // pred_check_branch
          %278 = sbr.rel (%p276) target = $region48
        $region47: #{tpu_custom_call.1} parent=39 // pred_region
          %279 = dma.done %s272, 128
        $region48: #{tpu_custom_call.1} parent=39 // pred_fallthru
          _
        // Predicated region
        $region49: #{tpu_custom_call.1} parent=39 // pred_check
          %p280 = pneg %p107
        $region50: #{tpu_custom_call.1} parent=39 // pred_check_branch
          %282 = sbr.rel (%p280) target = $region52
        $region51: #{tpu_custom_call.1} parent=39 // pred_region
          %283 = dma.done [#allocation9], 512
        $region52: #{tpu_custom_call.1} parent=39 // pred_fallthru
          _
        %s284 = sand.u32 %s45, 1
        %s285 = scalar_lea.sflag [#allocation6], %s284
        %s286 = sand.u32 %s45, 1
        %s287 = smul.addr %s286, 32
        %s288 = scalar_lea.vmem [#allocation5], %s287
        %p289 = pneg %p58
        %p290 = pneg %p55
        %s291 = sand.u32 %s25, 1
        %s292 = scalar_lea.sflag [#allocation9], %s291
        %s293 = sand.u32 %s73, 1
        %s294 = smul.addr %s293, 8
        %s295 = scalar_lea.vmem [#allocation8], %s294
        %p296 = pneg %p86
        %p297 = pneg %p83
        %p298 = pneg %p107
        %p299 = pneg %p104
        %p300 = pneg %p128
        %p301 = pneg %p125
        %p302 = pneg %p149
        %p303 = pneg %p146
        %p304 = pneg %p177
        %p305 = pneg %p174
        %s306 = sand.u32 %s164, 1
        %s307 = scalar_lea.sflag [#allocation7], %s306
        %s308 = sand.u32 %s164, 1
        %s309 = smul.addr %s308, 32
        %s310 = scalar_lea.vmem [#allocation11], %s309
        %s311 = smul.u32 4, %s30
        %p315 = scmp.eq.s32.totalorder %s30, 0
        // Predicated region
        $region53: #{tpu_custom_call.1} parent=39 // pred_check
          %p316 = pneg %p315
        $region54: #{tpu_custom_call.1} parent=39 // pred_check_branch
          %318 = sbr.rel (%p316) target = $region56
        $region55: #{tpu_custom_call.1} parent=39 // pred_region
          %v319 = vld [vmem:[%s266] sm:$0xff]
          %v320 = vld [vmem:[%s266 + $0x8] sm:$0xff]
          %v321 = vld [vmem:[%s266 + $0x10] sm:$0xff]
          %v322 = vld [vmem:[%s266 + $0x18] sm:$0xff]
          %v323 = vld [vmem:[#allocation10] sm:$0xff]
          %v324 = vld [vmem:[#allocation10 + $0x8] sm:$0xff]
          %v325 = vld [vmem:[#allocation10 + $0x10] sm:$0xff]
          %v326 = vld [vmem:[#allocation10 + $0x18] sm:$0xff]
          %vm327 = vcmask 261120
          %v329 = vsel %vm327, %v319, 0
          %v332 = vsel %vm327, %v320, 0
          %v335 = vsel %vm327, %v321, 0
          %v338 = vsel %vm327, %v322, 0
          %340 = vmatprep.subr.mxu0 0.0
          %341 = vmatpush1.msra.mxu0 %v323
          %342 = vmatprep.subr.mxu0 0.0
          %343 = vmatpush1.msra.mxu0 %v324
          %344 = vmatprep.subr.mxu0 0.0
          %345 = vmatpush1.msra.mxu0 %v325
          %346 = vmatprep.subr.mxu0 0.0
          %347 = vmatpush1.msra.mxu0 %v326
          %348 = vmatprep.subr.mxu0 0.0
          %349 = vmatpush1.msra.mxu0 0.0
          %350 = vmatprep.subr.mxu0 0.0
          %351 = vmatpush1.msra.mxu0 0.0
          %352 = vmatprep.subr.mxu0 0.0
          %353 = vmatpush1.msra.mxu0 0.0
          %354 = vmatprep.subr.mxu0 0.0
          %355 = vmatpush1.msra.mxu0 0.0
          %356 = vmatprep.subr.mxu0 0.0
          %357 = vmatpush1.msra.mxu0 0.0
          %358 = vmatprep.subr.mxu0 0.0
          %359 = vmatpush1.msra.mxu0 0.0
          %360 = vmatprep.subr.mxu0 0.0
          %361 = vmatpush1.msra.mxu0 0.0
          %362 = vmatprep.subr.mxu0 0.0
          %363 = vmatpush1.msra.mxu0 0.0
          %364 = vmatprep.subr.mxu0 0.0
          %365 = vmatpush1.msra.mxu0 0.0
          %366 = vmatprep.subr.mxu0 0.0
          %367 = vmatpush1.msra.mxu0 0.0
          %368 = vmatprep.subr.mxu0 0.0
          %369 = vmatpush1.msra.mxu0 0.0
          %370 = vmatprep.subr.mxu0 0.0
          %371 = vmatpush1.msra.mxu0 0.0
          %372 = vmatprep.subr.mxu0 0.0
          %373 = vmatpush1.msra.mxu0 0.0
          %374 = vmatprep.subr.mxu0 0.0
          %375 = vmatpush1.msra.mxu0 0.0
          %376 = vmatprep.subr.mxu0 0.0
          %377 = vmatpush1.msra.mxu0 0.0
          %378 = vmatprep.subr.mxu0 0.0
          %379 = vmatpush1.msra.mxu0 0.0
          %380 = vmatprep.subr.mxu0 0.0
          %381 = vmatpush1.msra.mxu0 0.0
          %382 = vmatprep.subr.mxu0 0.0
          %383 = vmatpush1.msra.mxu0 0.0
          %384 = vmatprep.subr.mxu0 0.0
          %385 = vmatpush1.msra.mxu0 0.0
          %386 = vmatprep.subr.mxu0 0.0
          %387 = vmatpush1.msra.mxu0 0.0
          %388 = vmatprep.subr.mxu0 0.0
          %389 = vmatpush1.msra.mxu0 0.0
          %390 = vmatprep.subr.mxu0 0.0
          %391 = vmatpush1.msra.mxu0 0.0
          %392 = vmatprep.subr.mxu0 0.0
          %393 = vmatpush1.msra.mxu0 0.0
          %394 = vmatprep.subr.mxu0 0.0
          %395 = vmatpush1.msra.mxu0 0.0
          %396 = vmatprep.subr.mxu0 0.0
          %397 = vmatpush1.msra.mxu0 0.0
          %398 = vmatprep.subr.mxu0 0.0
          %399 = vmatpush1.msra.mxu0 0.0
          %400 = vmatprep.subr.mxu0 0.0
          %401 = vmatpush1.msra.mxu0 0.0
          %402 = vmatprep.subr.mxu0 0.0
          %403 = vmatpush1.msra.mxu0 0.0
          %404 = vmatprep.mubr.f32.mxu0 0.0
          %405 = vmatmul.mubr.f32.gmra.mrb[0].mxu0 %v329
          %v406 = vpop.f32.mrb[0].mxu0
          %v407 = vadd.f32 0.0, %v406
          %v408 = vpop.f32.mrb[0].mxu0
          %409 = vmatprep.mubr.f32.mxu0 0.0
          %410 = vmatmul.mubr.f32.gmra.mrb[0].mxu0 %v332
          %v411 = vpop.f32.mrb[0].mxu0
          %v412 = vadd.f32 0.0, %v411
          %v413 = vpop.f32.mrb[0].mxu0
          %414 = vmatprep.mubr.f32.mxu0 0.0
          %415 = vmatmul.mubr.f32.gmra.mrb[0].mxu0 %v335
          %v416 = vpop.f32.mrb[0].mxu0
          %v417 = vadd.f32 0.0, %v416
          %v418 = vpop.f32.mrb[0].mxu0
          %419 = vmatprep.mubr.f32.mxu0 0.0
          %420 = vmatmul.mubr.f32.gmra.mrb[0].mxu0 %v338
          %v421 = vpop.f32.mrb[0].mxu0
          %v422 = vadd.f32 0.0, %v421
          %v423 = vpop.f32.mrb[0].mxu0
          %424 = vdwg.mxu0
          %v425 = vld [vmem:[%s3] sm:$0x1]
          %v426 = vld [vmem:[%s4] sm:$0x1]
          %v427 = vpack.c.bf16 %v412, %v407
          %v428 = vpack.c.bf16 %v422, %v417
          %429 = vst [vmem:[#allocation2] sm:$0xff] %v427
          %430 = vst [vmem:[#allocation2 + $0x8] sm:$0xff] %v428
          %v432 = vlaneseq
          %v433 = vshrl.u32 %v432, 7
          %v434 = vsub.s32 0, %v433
          %v435 = vrot.slane %v425, %v434
          %v437 = vmul.f32 %v407, %v435
          %v438 = vmul.f32 %v412, %v435
          %v439 = vmul.f32 %v417, %v435
          %v440 = vmul.f32 %v422, %v435
          %441 = vadd.xlane.f32.xlu0 %v437
          %v442 = vpop.xlane.xlu0 %441
          %443 = vadd.xlane.f32.xlu0 %v438
          %v444 = vpop.xlane.xlu0 %443
          %445 = vadd.xlane.f32.xlu0 %v439
          %v446 = vpop.xlane.xlu0 %445
          %447 = vadd.xlane.f32.xlu0 %v440
          %v448 = vpop.xlane.xlu0 %447
          %vm449 = vcmask 7168
          %450 = vst.msk [vmem:[#allocation3] sm:$0xff] %vm449, %v442
          %451 = vst.msk [vmem:[#allocation3 + $0x8] sm:$0xff] %vm449, %v444
          %452 = vst.msk [vmem:[#allocation3 + $0x10] sm:$0xff] %vm449, %v446
          %453 = vst.msk [vmem:[#allocation3 + $0x18] sm:$0xff] %vm449, %v448
          %454 = vmatprep.subr.mxu0 0.0
          %455 = vmatpush1.xpose.msra.mxu0 %v407
          %456 = vmatprep.subr.mxu0 0.0
          %457 = vmatpush1.xpose.msra.mxu0 %v412
          %458 = vmatprep.subr.mxu0 0.0
          %459 = vmatpush1.xpose.msra.mxu0 %v417
          %460 = vmatprep.subr.mxu0 0.0
          %461 = vmatpush1.xpose.msra.mxu0 %v422
          %462 = vmatprep.subr.mxu0 0.0
          %463 = vmatpush1.xpose.msra.mxu0 0.0
          %464 = vmatprep.subr.mxu0 0.0
          %465 = vmatpush1.xpose.msra.mxu0 0.0
          %466 = vmatprep.subr.mxu0 0.0
          %467 = vmatpush1.xpose.msra.mxu0 0.0
          %468 = vmatprep.subr.mxu0 0.0
          %469 = vmatpush1.xpose.msra.mxu0 0.0
          %470 = vmatprep.subr.mxu0 0.0
          %471 = vmatpush1.xpose.msra.mxu0 0.0
          %472 = vmatprep.subr.mxu0 0.0
          %473 = vmatpush1.xpose.msra.mxu0 0.0
          %474 = vmatprep.subr.mxu0 0.0
          %475 = vmatpush1.xpose.msra.mxu0 0.0
          %476 = vmatprep.subr.mxu0 0.0
          %477 = vmatpush1.xpose.msra.mxu0 0.0
          %478 = vmatprep.subr.mxu0 0.0
          %479 = vmatpush1.xpose.msra.mxu0 0.0
          %480 = vmatprep.subr.mxu0 0.0
          %481 = vmatpush1.xpose.msra.mxu0 0.0
          %482 = vmatprep.subr.mxu0 0.0
          %483 = vmatpush1.xpose.msra.mxu0 0.0
          %484 = vmatprep.subr.mxu0 0.0
          %485 = vmatpush1.xpose.msra.mxu0 0.0
          %486 = vmatprep.subr.mxu0 0.0
          %487 = vmatpush1.xpose.msra.mxu0 0.0
          %488 = vmatprep.subr.mxu0 0.0
          %489 = vmatpush1.xpose.msra.mxu0 0.0
          %490 = vmatprep.subr.mxu0 0.0
          %491 = vmatpush1.xpose.msra.mxu0 0.0
          %492 = vmatprep.subr.mxu0 0.0
          %493 = vmatpush1.xpose.msra.mxu0 0.0
          %494 = vmatprep.subr.mxu0 0.0
          %495 = vmatpush1.xpose.msra.mxu0 0.0
          %496 = vmatprep.subr.mxu0 0.0
          %497 = vmatpush1.xpose.msra.mxu0 0.0
          %498 = vmatprep.subr.mxu0 0.0
          %499 = vmatpush1.xpose.msra.mxu0 0.0
          %500 = vmatprep.subr.mxu0 0.0
          %501 = vmatpush1.xpose.msra.mxu0 0.0
          %502 = vmatprep.subr.mxu0 0.0
          %503 = vmatpush1.xpose.msra.mxu0 0.0
          %504 = vmatprep.subr.mxu0 0.0
          %505 = vmatpush1.xpose.msra.mxu0 0.0
          %506 = vmatprep.subr.mxu0 0.0
          %507 = vmatpush1.xpose.msra.mxu0 0.0
          %508 = vmatprep.subr.mxu0 0.0
          %509 = vmatpush1.xpose.msra.mxu0 0.0
          %510 = vmatprep.subr.mxu0 0.0
          %511 = vmatpush1.xpose.msra.mxu0 0.0
          %512 = vmatprep.subr.mxu0 0.0
          %513 = vmatpush1.xpose.msra.mxu0 0.0
          %514 = vmatprep.subr.mxu0 0.0
          %515 = vmatpush1.xpose.msra.mxu0 0.0
          %516 = vmatprep.subr.mxu0 0.0
          %517 = vmatpush1.xpose.msra.mxu0 0.0
          %518 = vmatprep.mubr.f32.mxu0 0.0
          %519 = vmatmul.mubr.f32.gmra.mrb[0].mxu0 %v426
          %v520 = vpop.f32.mrb[0].mxu0
          %v521 = vadd.f32 0.0, %v520
          %v522 = vpop.f32.mrb[0].mxu0
          %523 = vdwg.mxu0
          %vm524 = vcmask 253952
          %525 = vst.msk [vmem:[#allocation4] sm:$0x1] %vm524, %v521
        $region56: #{tpu_custom_call.1} parent=39 // pred_fallthru
          _
        %s526 = smul.u32 %s30, 32
        %s527 = scalar_lea.vmem [#allocation3], %s526
        %v528 = vld [vmem:[%s527] sm:$0xff]
        %v529 = vld [vmem:[%s527 + $0x8] sm:$0xff]
        %v530 = vld [vmem:[%s527 + $0x10] sm:$0xff]
        %v531 = vld [vmem:[%s527 + $0x18] sm:$0xff]
        %v532 = vld [vmem:[#allocation4] sm:$0x1]
        %534 = vset.pattern.permute.xlu0 0
        %535 = vperm.xlu0 %534, %v528
        %v536 = vpop.permute.xlu0 %535
        %539 = vset.pattern.permute.xlu0 0
        %540 = vperm.xlu0 %539, %v529
        %v541 = vpop.permute.xlu0 %540
        %544 = vset.pattern.permute.xlu0 0
        %545 = vperm.xlu0 %544, %v530
        %v546 = vpop.permute.xlu0 %545
        %549 = vset.pattern.permute.xlu0 0
        %550 = vperm.xlu0 %549, %v531
        %v551 = vpop.permute.xlu0 %550
        %v554 = vlaneseq
        %v555 = vshrl.u32 %v554, 7
        %v556 = vsub.s32 0, %v555
        %v557 = vrot.slane %v532, %v556
        %v559 = vmul.f32 %v536, %v557
        %v560 = vmul.f32 %v541, %v557
        %v561 = vmul.f32 %v546, %v557
        %v562 = vmul.f32 %v551, %v557
        %vm563 = vcmp.gt.f32.partialorder %v559, 0.0
        %vm564 = vcmp.gt.f32.partialorder %v560, 0.0
        %vm565 = vcmp.gt.f32.partialorder %v561, 0.0
        %vm566 = vcmp.gt.f32.partialorder %v562, 0.0
        %v567 = vmul.f32 %v559, 0.01
        %v568 = vmul.f32 %v560, 0.01
        %v569 = vmul.f32 %v561, 0.01
        %v570 = vmul.f32 %v562, 0.01
        %v571 = vsel %vm563, %v559, %v567
        %v572 = vsel %vm564, %v560, %v568
        %v573 = vsel %vm565, %v561, %v569
        %v574 = vsel %vm566, %v562, %v570
        %v575 = vld [vmem:[%s275] sm:$0xff]
        %vm576 = vnez %v575
        %v577 = vsel %vm576, 16843009, 0
        %v578 = vunpack.c.0.s8 %v577
        %v579 = vunpack.c.1.s8 %v577
        %v580 = vunpack.c.2.s8 %v577
        %v581 = vunpack.c.3.s8 %v577
        %v582 = vpack.c.b16 %v578, %v578
        %v583 = vpack.c.b8 %v582, %v582
        %v584 = vpack.c.b16 %v579, %v579
        %v585 = vpack.c.b8 %v584, %v584
        %v586 = vpack.c.b16 %v580, %v580
        %v587 = vpack.c.b8 %v586, %v586
        %v588 = vpack.c.b16 %v581, %v581
        %v589 = vpack.c.b8 %v588, %v588
        %vm590 = vnez %v583
        %vm591 = vnez %v585
        %vm592 = vnez %v587
        %vm593 = vnez %v589
        %v594 = vsel %vm590, 16843009, 0
        %v595 = vsel %vm591, 16843009, 0
        %v596 = vsel %vm592, 16843009, 0
        %v597 = vsel %vm593, 16843009, 0
        %v598 = vunpack.c.0.s8 %v594
        %v599 = vunpack.c.0.s8 %v595
        %v600 = vunpack.c.0.s8 %v596
        %v601 = vunpack.c.0.s8 %v597
        %vm602 = vcmp.ne.s32.totalorder %v598, 0
        %vm603 = vcmp.ne.s32.totalorder %v599, 0
        %vm604 = vcmp.ne.s32.totalorder %v600, 0
        %vm605 = vcmp.ne.s32.totalorder %v601, 0
        %v606 = vsel %vm602, %v571, -9e+15
        %v607 = vsel %vm603, %v572, -9e+15
        %v608 = vsel %vm604, %v573, -9e+15
        %v609 = vsel %vm605, %v574, -9e+15
        %vm610 = vcmask 261120
        %v611 = vsel %vm610, %v606, -inf
        %612 = vmax.xlane.f32.xlu0 %v611
        %v613 = vpop.xlane.xlu0 %612
        %v614 = vsel %vm610, %v607, -inf
        %615 = vmax.xlane.f32.xlu0 %v614
        %v616 = vpop.xlane.xlu0 %615
        %v617 = vsel %vm610, %v608, -inf
        %618 = vmax.xlane.f32.xlu0 %v617
        %v619 = vpop.xlane.xlu0 %618
        %v620 = vsel %vm610, %v609, -inf
        %621 = vmax.xlane.f32.xlu0 %v620
        %v622 = vpop.xlane.xlu0 %621
        %v623 = vsub.f32 %v606, %v613
        %v624 = vsub.f32 %v607, %v616
        %v625 = vsub.f32 %v608, %v619
        %v626 = vsub.f32 %v609, %v622
        %v627 = vmul.f32 %v623, 1.442695
        %v628 = vpow.pop %v627
        %v629 = vmul.f32 %v624, 1.442695
        %v630 = vpow.pop %v629
        %v631 = vmul.f32 %v625, 1.442695
        %v632 = vpow.pop %v631
        %v633 = vmul.f32 %v626, 1.442695
        %v634 = vpow.pop %v633
        %v635 = vsel %vm610, %v628, 0.0
        %636 = vadd.xlane.f32.xlu0 %v635
        %v637 = vpop.xlane.xlu0 %636
        %v638 = vsel %vm610, %v630, 0.0
        %639 = vadd.xlane.f32.xlu0 %v638
        %v640 = vpop.xlane.xlu0 %639
        %v641 = vsel %vm610, %v632, 0.0
        %642 = vadd.xlane.f32.xlu0 %v641
        %v643 = vpop.xlane.xlu0 %642
        %v644 = vsel %vm610, %v634, 0.0
        %645 = vadd.xlane.f32.xlu0 %v644
        %v646 = vpop.xlane.xlu0 %645
        %v647 = vrcp.pop %v637
        %v648 = vrcp.pop %v640
        %v649 = vrcp.pop %v643
        %v650 = vrcp.pop %v646
        %v651 = vmul.f32 %v628, %v647
        %v652 = vmul.f32 %v630, %v648
        %v653 = vmul.f32 %v632, %v649
        %v654 = vmul.f32 %v634, %v650
        %v655 = vsel %vm602, %v651, 0.0
        %v656 = vsel %vm603, %v652, 0.0
        %v657 = vsel %vm604, %v653, 0.0
        %v658 = vsel %vm605, %v654, 0.0
        %v659 = vpack.c.bf16 %v656, %v655
        %v660 = vpack.c.bf16 %v658, %v657
        %v661 = vld [vmem:[#allocation2] sm:$0xff]
        %v662 = vld [vmem:[#allocation2 + $0x8] sm:$0xff]
        %v664 = vsel %vm610, %v659, 0
        %v667 = vsel %vm610, %v660, 0
        %669 = vmatprep.subr.bf16.mxu0 0
        %670 = vmatpush1.bf16.msra.mxu0 %v661
        %671 = vmatprep.subr.bf16.mxu0 0
        %672 = vmatpush1.bf16.msra.mxu0 %v662
        %673 = vmatprep.subr.bf16.mxu0 0
        %674 = vmatpush1.bf16.msra.mxu0 0
        %675 = vmatprep.subr.bf16.mxu0 0
        %676 = vmatpush1.bf16.msra.mxu0 0
        %677 = vmatprep.subr.bf16.mxu0 0
        %678 = vmatpush1.bf16.msra.mxu0 0
        %679 = vmatprep.subr.bf16.mxu0 0
        %680 = vmatpush1.bf16.msra.mxu0 0
        %681 = vmatprep.subr.bf16.mxu0 0
        %682 = vmatpush1.bf16.msra.mxu0 0
        %683 = vmatprep.subr.bf16.mxu0 0
        %684 = vmatpush1.bf16.msra.mxu0 0
        %685 = vmatprep.subr.bf16.mxu0 0
        %686 = vmatpush1.bf16.msra.mxu0 0
        %687 = vmatprep.subr.bf16.mxu0 0
        %688 = vmatpush1.bf16.msra.mxu0 0
        %689 = vmatprep.subr.bf16.mxu0 0
        %690 = vmatpush1.bf16.msra.mxu0 0
        %691 = vmatprep.subr.bf16.mxu0 0
        %692 = vmatpush1.bf16.msra.mxu0 0
        %693 = vmatprep.subr.bf16.mxu0 0
        %694 = vmatpush1.bf16.msra.mxu0 0
        %695 = vmatprep.subr.bf16.mxu0 0
        %696 = vmatpush1.bf16.msra.mxu0 0
        %697 = vmatprep.subr.bf16.mxu0 0
        %698 = vmatpush1.bf16.msra.mxu0 0
        %699 = vmatprep.subr.bf16.mxu0 0
        %700 = vmatpush1.bf16.msra.mxu0 0
        %701 = vmatprep.mubr.bf16.mxu0 0
        %702 = vmatmul.mubr.bf16.gmra.mrb[0].mxu0 %v664
        %v703 = vpop.f32.mrb[0].mxu0
        %v704 = vadd.f32 0.0, %v703
        %v705 = vpop.f32.mrb[0].mxu0
        %v706 = vpop.f32.mrb[0].mxu0
        %v707 = vadd.f32 0.0, %v706
        %v708 = vpop.f32.mrb[0].mxu0
        %709 = vmatprep.mubr.bf16.mxu0 0
        %710 = vmatmul.mubr.bf16.gmra.mrb[0].mxu0 %v667
        %v711 = vpop.f32.mrb[0].mxu0
        %v712 = vadd.f32 0.0, %v711
        %v713 = vpop.f32.mrb[0].mxu0
        %v714 = vpop.f32.mrb[0].mxu0
        %v715 = vadd.f32 0.0, %v714
        %v716 = vpop.f32.mrb[0].mxu0
        %717 = vdwg.mxu0
        %vm718 = vcmp.gt.f32.partialorder %v704, 0.0
        %vm719 = vcmp.gt.f32.partialorder %v707, 0.0
        %vm720 = vcmp.gt.f32.partialorder %v712, 0.0
        %vm721 = vcmp.gt.f32.partialorder %v715, 0.0
        %v722 = vmin.f32 %v704, 0.0
        %v723 = vmin.f32 %v707, 0.0
        %v724 = vmin.f32 %v712, 0.0
        %v725 = vmin.f32 %v715, 0.0
        %v726 = vmul.f32 %v722, 1.442695
        %v727 = vpow.pop %v726
        %v728 = vmul.f32 %v723, 1.442695
        %v729 = vpow.pop %v728
        %v730 = vmul.f32 %v724, 1.442695
        %v731 = vpow.pop %v730
        %v732 = vmul.f32 %v725, 1.442695
        %v733 = vpow.pop %v732
        %v734 = vsub.f32 %v727, 1.0
        %v735 = vsub.f32 %v729, 1.0
        %v736 = vsub.f32 %v731, 1.0
        %v737 = vsub.f32 %v733, 1.0
        %v738 = vsel %vm718, %v704, %v734
        %v739 = vsel %vm719, %v707, %v735
        %v740 = vsel %vm720, %v712, %v736
        %v741 = vsel %vm721, %v715, %v737
        %742 = vst [vmem:[%s310] sm:$0xff] %v738
        %743 = vst [vmem:[%s310 + $0x8] sm:$0xff] %v739
        %744 = vst [vmem:[%s310 + $0x10] sm:$0xff] %v740
        %745 = vst [vmem:[%s310 + $0x18] sm:$0xff] %v741
        %s746 = sand.u32 %s164, 1
        %s747 = scalar_lea.sflag [#allocation7], %s746
        %s748 = sand.u32 %s164, 1
        %s749 = smul.addr %s748, 32
        %s750 = scalar_lea.vmem [#allocation11], %s749
        // Predicated region
        $region57: #{tpu_custom_call.1} parent=39 // pred_check
          %p751 = pneg %p174
        $region58: #{tpu_custom_call.1} parent=39 // pred_check_branch
          %753 = sbr.rel (%p751) target = $region60
        $region59: #{tpu_custom_call.1} parent=39 // pred_region
          %s754 = smul.u32 4, %s30
          %s756 = ssub.s32 512, 512
          %757 = vsyncadd %s747, %s756
          %s758 = smul.addr %s29, 4
          %s759 = sadd.s32 %s754, %s758
          %s760 = smul.addr %s759, 128
          %s761 = scalar_lea.hbm %s5, %s760
          %s762 = sshll.u32 %s750, 4
          %s763 = int_to_ptr.vmem [resolvable:$true] %s762
          %768 = dma.vmem_to_hbm [thread:$0]  %s763, 512, %s761, %s747, 128, 128, 8
        $region60: #{tpu_custom_call.1} parent=39 // pred_fallthru
          _
      $region40: #{tpu_custom_call.1} parent=5 // pred_fallthru
        _
      %p769 = scmp.le.s32.totalorder 2, %s20
      // Predicated region
      $region61: #{tpu_custom_call.1} parent=5 // pred_check
        %p770 = pneg %p769
      $region62: #{tpu_custom_call.1} parent=5 // pred_check_branch
        %772 = sbr.rel (%p770) target = $region64
      $region63: #{tpu_custom_call.1} parent=5 // pred_region
        %s773 = ssub.s32 %s20, 2
        // Predicated region
        $region65: #{tpu_custom_call.1} parent=63 // pred_check
          %p774 = pneg %p180
        $region66: #{tpu_custom_call.1} parent=63 // pred_check_branch
          %776 = sbr.rel (%p774) target = $region68
        $region67: #{tpu_custom_call.1} parent=63 // pred_region
          %s777 = sand.u32 %s165, 1
          %s778 = scalar_lea.sflag [#allocation7], %s777
          %s779 = sand.u32 %s165, 1
          %s780 = smul.addr %s779, 32
          %s781 = scalar_lea.vmem [#allocation11], %s780
          %782 = dma.done %s778, 512
        $region68: #{tpu_custom_call.1} parent=63 // pred_fallthru
          _
      $region64: #{tpu_custom_call.1} parent=5 // pred_fallthru
        _
    $region6: #{tpu_custom_call.1} parent=1 // loop_footer
      %s24 = sadd.s32 1, %s20
    $region7: #{tpu_custom_call.1} parent=1 // loop_footer_branch
      %19 = sbr.rel target = $region3
    $region8: #{tpu_custom_call.1} parent=1 // loop_exit
      _
    %783 = vsyncpa [#allocation6], 1
    %s784 = scalar_lea.sflag [#allocation6], 1
    %785 = vsyncpa %s784, 1
    %786 = vsyncpa [#allocation9], 1
    %s787 = scalar_lea.sflag [#allocation9], 1
    %788 = vsyncpa %s787, 1
    %789 = vsyncpa [#allocation7], 1
    %s790 = scalar_lea.sflag [#allocation7], 1
    %791 = vsyncpa %s790, 1

</llo_original>
